<compile_context>
chip_gen: v7x
topology: tpu7x:2x2x1
jax: 0.10.0
libtpu: 0.0.40
codegen_flags: <defaults>
</compile_context>

<pallas_src>
import functools
import math

import jax
import jax.numpy as jnp
from jax.experimental import pallas as pl
from jax.experimental.pallas import tpu as pltpu

BATCH = 8
IN_FEATURES = 32
OUT_FEATURES = 128
DROPOUT_P = 0.1
BN_EPS = 1e-5


def _submodule_kernel(*refs, dropout_p):
    """Linear -> ReLU -> BatchNorm1d(train) -> Dropout on one [batch, out] tile."""
    if dropout_p > 0.0:
        x_ref, w_ref, b_ref, gamma_ref, beta_ref, bits_ref, o_ref = refs
    else:
        x_ref, w_ref, b_ref, gamma_ref, beta_ref, o_ref = refs
        bits_ref = None

    # ---- Linear (MXU) + bias + ReLU ----
    y = jnp.dot(x_ref[...], w_ref[...], preferred_element_type=jnp.float32)
    y = jnp.maximum(y + b_ref[...], 0.0)

    # ---- BatchNorm1d, training semantics: batch mean, biased variance ----
    mean = jnp.mean(y, axis=0, keepdims=True)
    centered = y - mean
    var = jnp.mean(centered * centered, axis=0, keepdims=True)
    rstd = jax.lax.rsqrt(var + jnp.float32(BN_EPS))  # EUP slot, effectively free

    # ---- Fused BN-affine + inverted-dropout scale: one FMA epilogue ----
    inv_keep = (jnp.float32(1.0 / (1.0 - dropout_p))
                if dropout_p > 0.0 else jnp.float32(1.0))
    g_rstd = gamma_ref[...] * rstd                       # [1, out]
    scale = g_rstd * inv_keep                            # [1, out]
    shift = (beta_ref[...] - mean * g_rstd) * inv_keep   # [1, out]
    out = y * scale + shift

    if dropout_p > 0.0:
        # Integer-threshold keep test: P(keep) = 1 - p, on raw uint32 bits.
        thresh = jnp.uint32(int((1.0 - dropout_p) * (2 ** 32)))
        keep = bits_ref[...] < thresh
        out = jnp.where(keep, out, jnp.float32(0.0))

    o_ref[...] = out.astype(o_ref.dtype)


def submodule_forward(x, w_t, b, gamma, beta, key, *, dropout_p=DROPOUT_P):
    """Single SubModule forward: x [batch, in] -> [batch, out]. No grid (one tile)."""
    n = x.shape[0]
    out_f = w_t.shape[1]
    use_dropout = dropout_p > 0.0

    args = [x, w_t, b, gamma, beta]
    if use_dropout:
        # TODO(synk): dropout mask comes from JAX's PRNG stream, so it is deterministic
        # per key but not bit-identical to torch's RNG stream.
        args.append(jax.random.bits(key, (n, out_f), dtype=jnp.uint32))

    vmem = pl.BlockSpec(memory_space=pltpu.MemorySpace.VMEM)
    kernel = functools.partial(_submodule_kernel,
                               dropout_p=dropout_p if use_dropout else 0.0)
    return pl.pallas_call(
        kernel,
        out_shape=jax.ShapeDtypeStruct((n, out_f), jnp.float32),
        in_specs=[vmem] * len(args),
        out_specs=vmem,
    )(*args)


def submodule_forward_batched(xs, w_t, b, gamma, beta, key, *, dropout_p=DROPOUT_P):
    """Many independent SubModule micro-batches in ONE pallas_call.

    xs: [num_instances, batch, in] -> [num_instances, batch, out].
    A leading "parallel" grid axis amortizes launch/step overhead and lets v7x split
    the instances across its two TensorCores.  BatchNorm stats are computed per
    instance (per grid step), matching one nn.Module call per micro-batch.
    """
    num, n, in_f = xs.shape
    out_f = w_t.shape[1]
    use_dropout = dropout_p > 0.0

    in_specs = [
        pl.BlockSpec((None, n, in_f), lambda i: (i, 0, 0)),   # per-instance x tile
        pl.BlockSpec(w_t.shape, lambda i: (0, 0)),            # shared weight
        pl.BlockSpec(b.shape, lambda i: (0, 0)),              # shared bias
        pl.BlockSpec(gamma.shape, lambda i: (0, 0)),          # shared bn gamma
        pl.BlockSpec(beta.shape, lambda i: (0, 0)),           # shared bn beta
    ]
    args = [xs, w_t, b, gamma, beta]
    if use_dropout:
        bits = jax.random.bits(key, (num, n, out_f), dtype=jnp.uint32)
        in_specs.append(pl.BlockSpec((None, n, out_f), lambda i: (i, 0, 0)))
        args.append(bits)

    kernel = functools.partial(_submodule_kernel,
                               dropout_p=dropout_p if use_dropout else 0.0)
    return pl.pallas_call(
        kernel,
        out_shape=jax.ShapeDtypeStruct((num, n, out_f), jnp.float32),
        grid=(num,),
        in_specs=in_specs,
        out_specs=pl.BlockSpec((None, n, out_f), lambda i: (i, 0, 0)),
        compiler_params=pltpu.CompilerParams(
            dimension_semantics=("parallel",)),
    )(*args)


def init_params(key, in_features, out_features):
    # nn.Linear default init: U(-1/sqrt(in), 1/sqrt(in)) for weight and bias.
    kw, kb = jax.random.split(key)
    bound = 1.0 / math.sqrt(in_features)
    w = jax.random.uniform(kw, (out_features, in_features), jnp.float32,
                           minval=-bound, maxval=bound)
    b = jax.random.uniform(kb, (out_features,), jnp.float32,
                           minval=-bound, maxval=bound)
    # BatchNorm1d default init: gamma=1, beta=0.
    gamma = jnp.ones((out_features,), jnp.float32)
    beta = jnp.zeros((out_features,), jnp.float32)
    return w, b, gamma, beta


if __name__ == "__main__":
    key = jax.random.PRNGKey(0)
    kx, kxs, kp, kd1, kd2 = jax.random.split(key, 5)

    w, b, gamma, beta = init_params(kp, IN_FEATURES, OUT_FEATURES)
    w_t = jnp.transpose(w)                    # [in, out] so the kernel does x @ W
    b2 = b.reshape(1, OUT_FEATURES)
    gamma2 = gamma.reshape(1, OUT_FEATURES)
    beta2 = beta.reshape(1, OUT_FEATURES)

    # --- single SubModule forward: [8, 32] -> [8, 128] ---
    x = jax.random.normal(kx, (BATCH, IN_FEATURES), jnp.float32)
    out_single = submodule_forward(x, w_t, b2, gamma2, beta2, kd1)
    jax.block_until_ready(out_single)
    assert out_single.shape == (BATCH, OUT_FEATURES)

    # --- batched form: 4 independent micro-batches, one pallas_call ---
    num = 4
    xs = jax.random.normal(kxs, (num, BATCH, IN_FEATURES), jnp.float32)
    out_batched = submodule_forward_batched(xs, w_t, b2, gamma2, beta2, kd2)
    jax.block_until_ready(out_batched)
    assert out_batched.shape == (num, BATCH, OUT_FEATURES)

    assert bool(jnp.all(jnp.isfinite(out_single)))
    assert bool(jnp.all(jnp.isfinite(out_batched)))
    print("KERNEL_OK")
</pallas_src>

<mosaic_0001>
module attributes {stable_mosaic.version = 11 : i64} {
  func.func @_submodule_kernel(%arg0: memref<8x32xf32, #tpu.memory_space<vmem>>, %arg1: memref<32x128xf32, #tpu.memory_space<vmem>>, %arg2: memref<1x128xf32, #tpu.memory_space<vmem>>, %arg3: memref<1x128xf32, #tpu.memory_space<vmem>>, %arg4: memref<1x128xf32, #tpu.memory_space<vmem>>, %arg5: memref<8x128xi32, #tpu.memory_space<vmem>>, %arg6: memref<8x128xf32, #tpu.memory_space<vmem>>) attributes {dimension_semantics = [], scalar_prefetch = 0 : i64, scratch_operands = 0 : i64, tpu.core_type = #tpu.core_type<tc>} {
    %c0 = arith.constant 0 : index
    %c0_0 = arith.constant 0 : index
    %0 = vector.load %arg0[%c0, %c0_0] : memref<8x32xf32, #tpu.memory_space<vmem>>, vector<8x32xf32>
    %c0_1 = arith.constant 0 : index
    %c0_2 = arith.constant 0 : index
    %1 = vector.load %arg1[%c0_1, %c0_2] : memref<32x128xf32, #tpu.memory_space<vmem>>, vector<32x128xf32>
    %cst = arith.constant dense<0.000000e+00> : vector<8x128xf32>
    %2 = tpu.matmul %0, %1, %cst {dimension_numbers = #tpu.dot_dimension_numbers<[1], [0], [0], [1], [0, 0, 1, 1], [], []>} : vector<8x32xf32>, vector<32x128xf32>, vector<8x128xf32> -> vector<8x128xf32>
    %c0_3 = arith.constant 0 : index
    %c0_4 = arith.constant 0 : index
    %3 = vector.load %arg2[%c0_3, %c0_4] : memref<1x128xf32, #tpu.memory_space<vmem>>, vector<1x128xf32>
    %4 = vector.broadcast %3 : vector<1x128xf32> to vector<8x128xf32>
    %5 = arith.addf %2, %4 : vector<8x128xf32>
    %cst_5 = arith.constant 0.000000e+00 : f32
    %6 = vector.broadcast %cst_5 : f32 to vector<8x128xf32>
    %7 = arith.maximumf %5, %6 : vector<8x128xf32>
    %cst_6 = arith.constant dense<0.000000e+00> : vector<128xf32>
    %8 = vector.multi_reduction <add>, %7, %cst_6 [0] : vector<8x128xf32> to vector<128xf32>
    %9 = vector.shape_cast %8 : vector<128xf32> to vector<1x128xf32>
    %cst_7 = arith.constant 8.000000e+00 : f32
    %10 = vector.broadcast %cst_7 : f32 to vector<1x128xf32>
    %11 = arith.divf %9, %10 : vector<1x128xf32>
    %12 = vector.broadcast %11 : vector<1x128xf32> to vector<8x128xf32>
    %13 = arith.subf %7, %12 : vector<8x128xf32>
    %14 = arith.mulf %13, %13 : vector<8x128xf32>
    %cst_8 = arith.constant dense<0.000000e+00> : vector<128xf32>
    %15 = vector.multi_reduction <add>, %14, %cst_8 [0] : vector<8x128xf32> to vector<128xf32>
    %16 = vector.shape_cast %15 : vector<128xf32> to vector<1x128xf32>
    %cst_9 = arith.constant 8.000000e+00 : f32
    %17 = vector.broadcast %cst_9 : f32 to vector<1x128xf32>
    %18 = arith.divf %16, %17 : vector<1x128xf32>
    %cst_10 = arith.constant 9.99999974E-6 : f32
    %19 = vector.broadcast %cst_10 : f32 to vector<1x128xf32>
    %20 = arith.addf %18, %19 : vector<1x128xf32>
    %21 = math.rsqrt %20 : vector<1x128xf32>
    %c0_11 = arith.constant 0 : index
    %c0_12 = arith.constant 0 : index
    %22 = vector.load %arg3[%c0_11, %c0_12] : memref<1x128xf32, #tpu.memory_space<vmem>>, vector<1x128xf32>
    %23 = arith.mulf %22, %21 : vector<1x128xf32>
    %cst_13 = arith.constant 1.11111116 : f32
    %24 = vector.broadcast %cst_13 : f32 to vector<1x128xf32>
    %25 = arith.mulf %23, %24 : vector<1x128xf32>
    %c0_14 = arith.constant 0 : index
    %c0_15 = arith.constant 0 : index
    %26 = vector.load %arg4[%c0_14, %c0_15] : memref<1x128xf32, #tpu.memory_space<vmem>>, vector<1x128xf32>
    %27 = arith.mulf %11, %23 : vector<1x128xf32>
    %28 = arith.subf %26, %27 : vector<1x128xf32>
    %cst_16 = arith.constant 1.11111116 : f32
    %29 = vector.broadcast %cst_16 : f32 to vector<1x128xf32>
    %30 = arith.mulf %28, %29 : vector<1x128xf32>
    %31 = vector.broadcast %25 : vector<1x128xf32> to vector<8x128xf32>
    %32 = arith.mulf %7, %31 : vector<8x128xf32>
    %33 = vector.broadcast %30 : vector<1x128xf32> to vector<8x128xf32>
    %34 = arith.addf %32, %33 : vector<8x128xf32>
    %c0_17 = arith.constant 0 : index
    %c0_18 = arith.constant 0 : index
    %35 = vector.load %arg5[%c0_17, %c0_18] : memref<8x128xi32, #tpu.memory_space<vmem>>, vector<8x128xi32>
    %c-429496730_i32 = arith.constant -429496730 : i32
    %36 = vector.broadcast %c-429496730_i32 : i32 to vector<8x128xi32>
    %37 = arith.cmpi ult, %35, %36 : vector<8x128xi32>
    %cst_19 = arith.constant 0.000000e+00 : f32
    %38 = vector.broadcast %cst_19 : f32 to vector<8x128xf32>
    %39 = arith.select %37, %34, %38 : vector<8x128xi1>, vector<8x128xf32>
    %c0_20 = arith.constant 0 : index
    %c0_21 = arith.constant 0 : index
    %40 = vector.load %arg6[%c0_20, %c0_21] : memref<8x128xf32, #tpu.memory_space<vmem>>, vector<8x128xf32>
    tpu.vector_store %arg6[%c0_20, %c0_21], %39 {strides = array<i32>} : memref<8x128xf32, #tpu.memory_space<vmem>>, vector<8x128xf32>,
    return
  }
}

</mosaic_0001>

<llo_original>
// kernel: tpu_custom_call.1
$region0: #{tpu_custom_call.1}
  #allocation0 [shape = 'u32[]', space=smem, size = 0x4, offset = 0x4, fixed_abs, tag = 'smem constant byte address 0x4 - core index']
  #allocation1 [shape = 'u32[144,128]{1,0:T(1,128)}', space=vmem, size = 0x12000, scoped, tag = 'internal scratch']
  %s0 = inlined_call_operand.hbm [shape: f32[8,32], index: 0, kind: input, shape index: {}]
  %s1 = inlined_call_operand.hbm [shape: f32[32,128], index: 1, kind: input, shape index: {}]
  %s2 = inlined_call_operand.vmem [shape: f32[1,128], index: 2, kind: input, shape index: {}]
  %s3 = inlined_call_operand.vmem [shape: f32[1,128], index: 3, kind: input, shape index: {}]
  %s4 = inlined_call_operand.vmem [shape: f32[1,128], index: 4, kind: input, shape index: {}]
  %s5 = inlined_call_operand.vmem [shape: u32[8,128], index: 5, kind: input, shape index: {}]
  %s6 = inlined_call_operand.hbm [shape: f32[8,128], index: 6, kind: output, shape index: {}]
  %s7 = sld [smem:[#allocation0]]
  $region42: #{tpu_custom_call.1} parent=0
    _
  %s9 = ssub.s32 1, %s7
  %s10 = scalar_select 0, %s9, %s7
  $region1: #{tpu_custom_call.1} parent=0
    #allocation2 [shape = 'u8[4096]{0}', space=vmem, size = 0x1000, scoped, tag = 'input window, operand 0, single buffered']
    #allocation3 [shape = 's32[1]{0}', space=sflag, size = 0x4, scoped, tag = 'scoped memory for tpu_custom_call.1']
    #allocation4 [shape = 's32[1]{0}', space=sflag, size = 0x4, scoped, tag = 'scoped memory for tpu_custom_call.1']
    #allocation5 [shape = 'u8[16384]{0}', space=vmem, size = 0x4000, scoped, tag = 'input window, operand 1, single buffered']
    #allocation6 [shape = 's32[1]{0}', space=sflag, size = 0x4, scoped, tag = 'scoped memory for tpu_custom_call.1']
    #allocation7 [shape = 'u8[4096]{0}', space=vmem, size = 0x1000, scoped, tag = 'output window, operand 0, single buffered']
    %11 = vsyncpa [#allocation3], 0
    %12 = vsyncpa [#allocation6], 0
    %13 = vsyncpa [#allocation4], 0
    // Predicated region
    $region2: #{tpu_custom_call.1} parent=1 // pred_check
      _
    $region3: #{tpu_custom_call.1} parent=1 // pred_check_branch
      %15 = sbr.rel (0) target = $region5
    $region4: #{tpu_custom_call.1} parent=1 // pred_region
      %s17 = ssub.s32 128, 128
      %18 = vsyncadd [#allocation3], %s17
      %s20 = sshll.u32 [#allocation2], 4
      %s21 = int_to_ptr.vmem [resolvable:$true] %s20
      %23 = dma.hbm_to_vmem [thread:$0]  %s0, 128, %s21, [#allocation3]
    $region5: #{tpu_custom_call.1} parent=1 // pred_fallthru
      _
    // Predicated region
    $region6: #{tpu_custom_call.1} parent=1 // pred_check
      _
    $region7: #{tpu_custom_call.1} parent=1 // pred_check_branch
      %25 = sbr.rel (0) target = $region9
    $region8: #{tpu_custom_call.1} parent=1 // pred_region
      %s27 = ssub.s32 512, 512
      %28 = vsyncadd [#allocation6], %s27
      %s29 = sshll.u32 [#allocation5], 4
      %s30 = int_to_ptr.vmem [resolvable:$true] %s29
      %35 = dma.hbm_to_vmem [thread:$0]  %s1, 512, %s30, [#allocation6], 128, 128, 8
    $region9: #{tpu_custom_call.1} parent=1 // pred_fallthru
      _
    // Predicated region
    $region10: #{tpu_custom_call.1} parent=1 // pred_check
      _
    $region11: #{tpu_custom_call.1} parent=1 // pred_check_branch
      %37 = sbr.rel (0) target = $region13
    $region12: #{tpu_custom_call.1} parent=1 // pred_region
      _
    $region13: #{tpu_custom_call.1} parent=1 // pred_fallthru
      _
    // Predicated region
    $region14: #{tpu_custom_call.1} parent=1 // pred_check
      _
    $region15: #{tpu_custom_call.1} parent=1 // pred_check_branch
      %39 = sbr.rel (0) target = $region17
    $region16: #{tpu_custom_call.1} parent=1 // pred_region
      _
    $region17: #{tpu_custom_call.1} parent=1 // pred_fallthru
      _
    // Predicated region
    $region18: #{tpu_custom_call.1} parent=1 // pred_check
      _
    $region19: #{tpu_custom_call.1} parent=1 // pred_check_branch
      %41 = sbr.rel (0) target = $region21
    $region20: #{tpu_custom_call.1} parent=1 // pred_region
      _
    $region21: #{tpu_custom_call.1} parent=1 // pred_fallthru
      _
    // Predicated region
    $region22: #{tpu_custom_call.1} parent=1 // pred_check
      _
    $region23: #{tpu_custom_call.1} parent=1 // pred_check_branch
      %43 = sbr.rel (0) target = $region25
    $region24: #{tpu_custom_call.1} parent=1 // pred_region
      _
    $region25: #{tpu_custom_call.1} parent=1 // pred_fallthru
      _
    // Predicated region
    $region26: #{tpu_custom_call.1} parent=1 // pred_check
      _
    $region27: #{tpu_custom_call.1} parent=1 // pred_check_branch
      %45 = sbr.rel (0) target = $region29
    $region28: #{tpu_custom_call.1} parent=1 // pred_region
      %46 = dma.done [#allocation3], 128
    $region29: #{tpu_custom_call.1} parent=1 // pred_fallthru
      _
    // Predicated region
    $region30: #{tpu_custom_call.1} parent=1 // pred_check
      _
    $region31: #{tpu_custom_call.1} parent=1 // pred_check_branch
      %48 = sbr.rel (0) target = $region33
    $region32: #{tpu_custom_call.1} parent=1 // pred_region
      %49 = dma.done [#allocation6], 512
    $region33: #{tpu_custom_call.1} parent=1 // pred_fallthru
      _
    %v50 = vld [vmem:[#allocation2] sm:$0xff]
    %v51 = vld [vmem:[#allocation5] sm:$0xff]
    %v52 = vld [vmem:[#allocation5 + $0x8] sm:$0xff]
    %v53 = vld [vmem:[#allocation5 + $0x10] sm:$0xff]
    %v54 = vld [vmem:[#allocation5 + $0x18] sm:$0xff]
    %v55 = vld [vmem:[%s2] sm:$0x1]
    %v57 = vlaneseq
    %v58 = vshrl.u32 %v57, 7
    %v59 = vsub.s32 0, %v58
    %v60 = vrot.slane %v55, %v59
    %vm62 = vcmask 261120
    %v64 = vsel %vm62, %v50, 0
    %66 = vmatprep.subr.mxu0 0.0
    %67 = vmatpush1.msra.mxu0 %v51
    %68 = vmatprep.subr.mxu0 0.0
    %69 = vmatpush1.msra.mxu0 %v52
    %70 = vmatprep.subr.mxu0 0.0
    %71 = vmatpush1.msra.mxu0 %v53
    %72 = vmatprep.subr.mxu0 0.0
    %73 = vmatpush1.msra.mxu0 %v54
    %74 = vmatprep.subr.mxu0 0.0
    %75 = vmatpush1.msra.mxu0 0.0
    %76 = vmatprep.subr.mxu0 0.0
    %77 = vmatpush1.msra.mxu0 0.0
    %78 = vmatprep.subr.mxu0 0.0
    %79 = vmatpush1.msra.mxu0 0.0
    %80 = vmatprep.subr.mxu0 0.0
    %81 = vmatpush1.msra.mxu0 0.0
    %82 = vmatprep.subr.mxu0 0.0
    %83 = vmatpush1.msra.mxu0 0.0
    %84 = vmatprep.subr.mxu0 0.0
    %85 = vmatpush1.msra.mxu0 0.0
    %86 = vmatprep.subr.mxu0 0.0
    %87 = vmatpush1.msra.mxu0 0.0
    %88 = vmatprep.subr.mxu0 0.0
    %89 = vmatpush1.msra.mxu0 0.0
    %90 = vmatprep.subr.mxu0 0.0
    %91 = vmatpush1.msra.mxu0 0.0
    %92 = vmatprep.subr.mxu0 0.0
    %93 = vmatpush1.msra.mxu0 0.0
    %94 = vmatprep.subr.mxu0 0.0
    %95 = vmatpush1.msra.mxu0 0.0
    %96 = vmatprep.subr.mxu0 0.0
    %97 = vmatpush1.msra.mxu0 0.0
    %98 = vmatprep.subr.mxu0 0.0
    %99 = vmatpush1.msra.mxu0 0.0
    %100 = vmatprep.subr.mxu0 0.0
    %101 = vmatpush1.msra.mxu0 0.0
    %102 = vmatprep.subr.mxu0 0.0
    %103 = vmatpush1.msra.mxu0 0.0
    %104 = vmatprep.subr.mxu0 0.0
    %105 = vmatpush1.msra.mxu0 0.0
    %106 = vmatprep.subr.mxu0 0.0
    %107 = vmatpush1.msra.mxu0 0.0
    %108 = vmatprep.subr.mxu0 0.0
    %109 = vmatpush1.msra.mxu0 0.0
    %110 = vmatprep.subr.mxu0 0.0
    %111 = vmatpush1.msra.mxu0 0.0
    %112 = vmatprep.subr.mxu0 0.0
    %113 = vmatpush1.msra.mxu0 0.0
    %114 = vmatprep.subr.mxu0 0.0
    %115 = vmatpush1.msra.mxu0 0.0
    %116 = vmatprep.subr.mxu0 0.0
    %117 = vmatpush1.msra.mxu0 0.0
    %118 = vmatprep.subr.mxu0 0.0
    %119 = vmatpush1.msra.mxu0 0.0
    %120 = vmatprep.subr.mxu0 0.0
    %121 = vmatpush1.msra.mxu0 0.0
    %122 = vmatprep.subr.mxu0 0.0
    %123 = vmatpush1.msra.mxu0 0.0
    %124 = vmatprep.subr.mxu0 0.0
    %125 = vmatpush1.msra.mxu0 0.0
    %126 = vmatprep.subr.mxu0 0.0
    %127 = vmatpush1.msra.mxu0 0.0
    %128 = vmatprep.subr.mxu0 0.0
    %129 = vmatpush1.msra.mxu0 0.0
    %130 = vmatprep.mubr.f32.mxu0 0.0
    %131 = vmatmul.mubr.f32.gmra.mrb[0].mxu0 %v64
    %v132 = vpop.f32.mrb[0].mxu0
    %v133 = vadd.f32 %v60, %v132
    %v134 = vpop.f32.mrb[0].mxu0
    %135 = vdwg.mxu0
    %v136 = vmax.f32 %v133, 0.0
    %v137 = vrot.slane %v136, 4
    %v138 = vadd.f32 %v136, %v137
    %v139 = vrot.slane %v138, 2
    %v140 = vadd.f32 %v138, %v139
    %v141 = vrot.slane %v140, 1
    %v142 = vadd.f32 %v140, %v141
    %v143 = vrcp.pop 8.0
    %v144 = vmul.f32 %v142, %v143
    %v145 = vsub.f32 %v136, %v144
    %v146 = vmul.f32 %v145, %v145
    %v147 = vrot.slane %v146, 4
    %v148 = vadd.f32 %v146, %v147
    %v149 = vrot.slane %v148, 2
    %v150 = vadd.f32 %v148, %v149
    %v151 = vrot.slane %v150, 1
    %v152 = vadd.f32 %v150, %v151
    %v153 = vmul.f32 %v152, %v143
    %v154 = vadd.f32 %v153, 1e-05
    %v155 = vrsqrt.pop %v154
    %v156 = vld [vmem:[%s3] sm:$0x1]
    %v157 = vmul.f32 %v156, %v155
    %v158 = vmul.f32 %v157, 1.1111112
    %v159 = vld [vmem:[%s4] sm:$0x1]
    %v160 = vmul.f32 %v144, %v157
    %v161 = vsub.f32 %v159, %v160
    %v162 = vmul.f32 %v161, 1.1111112
    %v164 = vlaneseq
    %v165 = vshrl.u32 %v164, 7
    %v166 = vsub.s32 0, %v165
    %v167 = vrot.slane %v158, %v166
    %v169 = vmul.f32 %v136, %v167
    %v171 = vlaneseq
    %v172 = vshrl.u32 %v171, 7
    %v173 = vsub.s32 0, %v172
    %v174 = vrot.slane %v162, %v173
    %v176 = vadd.f32 %v169, %v174
    %v177 = vld [vmem:[%s5] sm:$0xff]
    %vm178 = vcmp.lt.u32.totalorder %v177, 3865470566
    %v179 = vsel %vm178, %v176, 0.0
    %180 = vst [vmem:[#allocation7] sm:$0xff] %v179
    // Predicated region
    $region34: #{tpu_custom_call.1} parent=1 // pred_check
      _
    $region35: #{tpu_custom_call.1} parent=1 // pred_check_branch
      %182 = sbr.rel (0) target = $region37
    $region36: #{tpu_custom_call.1} parent=1 // pred_region
      %s184 = ssub.s32 128, 128
      %185 = vsyncadd [#allocation4], %s184
      %s187 = sshll.u32 [#allocation7], 4
      %s188 = int_to_ptr.vmem [resolvable:$true] %s187
      %190 = dma.vmem_to_hbm [thread:$0]  %s188, 128, %s6, [#allocation4]
    $region37: #{tpu_custom_call.1} parent=1 // pred_fallthru
      _
    // Predicated region
    $region38: #{tpu_custom_call.1} parent=1 // pred_check
      _
    $region39: #{tpu_custom_call.1} parent=1 // pred_check_branch
      %192 = sbr.rel (0) target = $region41
    $region40: #{tpu_custom_call.1} parent=1 // pred_region
      %193 = dma.done [#allocation4], 128
    $region41: #{tpu_custom_call.1} parent=1 // pred_fallthru
      _
    %194 = vsyncpa [#allocation3], 1
    %195 = vsyncpa [#allocation6], 1
    %196 = vsyncpa [#allocation4], 1

</llo_original>
